<compile_context>
chip_gen: v7x
topology: tpu7x:2x2x1
jax: 0.10.0
libtpu: 0.0.40
codegen_flags: <defaults>
</compile_context>

<pallas_src>
import jax
import jax.numpy as jnp
from jax.experimental import pallas as pl
from jax.experimental.pallas import tpu as pltpu


def _structure_decoder_kernel(row_ref, col_ref, zt_ref, w1a_ref, w1b_ref,
                              b1_ref, w2_ref, b2_ref, out_ref):
    # row_ref / col_ref : (1, TE) int32 edge endpoints for this tile.
    # zt_ref            : (C, N)  resident z^T.
    # w1a_ref / w1b_ref : (H, C)  first-layer weight halves (transposed).
    # b1_ref            : (H, 1)  first-layer bias (broadcast over lanes).
    # w2_ref            : (H, 1)  second-layer weight column.
    # b2_ref            : (1, 1)  second-layer bias.
    # out_ref           : (1, TE) edge probabilities (lane-dense).
    n_nodes = zt_ref.shape[1]
    te = row_ref.shape[1]

    # In-kernel gather via one-hot matmul (exact: selects one column per edge).
    node_ids = jax.lax.broadcasted_iota(jnp.int32, (n_nodes, te), 0)
    onehot_r = (row_ref[...] == node_ids).astype(jnp.float32)        # (N, TE)
    onehot_c = (col_ref[...] == node_ids).astype(jnp.float32)        # (N, TE)

    zt = zt_ref[...]                                                  # (C, N)
    zr = jnp.dot(zt, onehot_r, preferred_element_type=jnp.float32)    # (C, TE)
    zc = jnp.dot(zt, onehot_c, preferred_element_type=jnp.float32)    # (C, TE)

    # First linear layer, concat-free:
    #   W1^T @ cat([zr; zc]) == W1a^T @ zr + W1b^T @ zc
    hidden = jnp.dot(w1a_ref[...], zr, preferred_element_type=jnp.float32)
    hidden = hidden + jnp.dot(w1b_ref[...], zc,
                              preferred_element_type=jnp.float32)     # (H, TE)
    hidden = jnp.maximum(hidden + b1_ref[...], 0.0)                   # ReLU (VPU)

    # Second linear layer as VPU multiply + sublane reduction (avoids a
    # 1-useful-column MXU call): logit[e] = sum_h hidden[h, e] * w2[h].
    logit = jnp.sum(hidden * w2_ref[...], axis=0, keepdims=True)      # (1, TE)
    logit = logit + b2_ref[...]

    # sigmoid(x) == 0.5 * (tanh(x / 2) + 1): keeps the nonlinearity on the EUP,
    # now on a lane-dense (1, TE) vreg row.
    out_ref[...] = (0.5 * (jnp.tanh(0.5 * logit) + 1.0)).astype(out_ref.dtype)


def structure_decoder(params, z, edge_index, *, block_edges=1024):
    """Pallas forward for StructureDecoder.

    params: dict with
      w1: (2C, H)   (== PyTorch Linear(2C, H).weight.T)
      b1: (1, H)
      w2: (H, 1)    (== PyTorch Linear(H, 1).weight.T)
      b2: (1, 1)
    z: (num_nodes, C) float32
    edge_index: (2, E) int32
    returns: (E,) float32 edge probabilities.
    """
    n_nodes, c = z.shape
    w1, b1, w2, b2 = params["w1"], params["b1"], params["w2"], params["b2"]
    hdim = w1.shape[1]
    assert w1.shape[0] == 2 * c

    num_edges = edge_index.shape[1]

    # Edge tile size: lane dimension, multiple of 128; don't over-pad tiny inputs.
    block_edges = max(128, pl.cdiv(block_edges, 128) * 128)
    te = min(block_edges, pl.cdiv(num_edges, 128) * 128)
    e_pad = pl.cdiv(num_edges, te) * te
    pad = e_pad - num_edges

    # Pad the cheap int32 index arrays (NOT gathered features).  Padded edges
    # point at node 0; their outputs are sliced off below.
    row = edge_index[0].astype(jnp.int32)
    col = edge_index[1].astype(jnp.int32)
    if pad:
        row = jnp.pad(row, (0, pad))
        col = jnp.pad(col, (0, pad))
    row2d = row.reshape(1, e_pad)
    col2d = col.reshape(1, e_pad)

    f32 = jnp.float32
    zt = z.astype(f32).T                       # (C, N)   resident in VMEM
    w1a_t = w1[:c].astype(f32).T               # (H, C)
    w1b_t = w1[c:].astype(f32).T               # (H, C)
    b1_t = b1.astype(f32).reshape(hdim, 1)     # (H, 1)
    w2_c = w2.astype(f32).reshape(hdim, 1)     # (H, 1)
    b2_s = b2.astype(f32).reshape(1, 1)        # (1, 1)

    grid = (e_pad // te,)

    cost = pl.CostEstimate(
        flops=2 * e_pad * (2 * n_nodes * c + 2 * c * hdim + hdim),
        transcendentals=e_pad,
        bytes_accessed=(3 * e_pad * 4
                        + 4 * (zt.size + w1a_t.size + w1b_t.size
                               + b1_t.size + w2_c.size + b2_s.size)),
    )

    out = pl.pallas_call(
        _structure_decoder_kernel,
        out_shape=jax.ShapeDtypeStruct((1, e_pad), jnp.float32),
        grid=grid,
        in_specs=[
            pl.BlockSpec((1, te), lambda i: (0, i)),          # row indices tile
            pl.BlockSpec((1, te), lambda i: (0, i)),          # col indices tile
            pl.BlockSpec((c, n_nodes), lambda i: (0, 0)),     # z^T, resident
            pl.BlockSpec((hdim, c), lambda i: (0, 0)),        # W1 src half^T
            pl.BlockSpec((hdim, c), lambda i: (0, 0)),        # W1 dst half^T
            pl.BlockSpec((hdim, 1), lambda i: (0, 0)),        # b1
            pl.BlockSpec((hdim, 1), lambda i: (0, 0)),        # w2 column
            pl.BlockSpec((1, 1), lambda i: (0, 0)),           # b2
        ],
        out_specs=pl.BlockSpec((1, te), lambda i: (0, i)),    # lane-dense output
        compiler_params=pltpu.CompilerParams(
            dimension_semantics=("parallel",),                # megacore-shardable
        ),
        cost_estimate=cost,
    )(row2d, col2d, zt, w1a_t, w1b_t, b1_t, w2_c, b2_s)

    # .squeeze() of the PyTorch forward + drop padded edges.
    return out[0, :num_edges]


def _reference(params, z, edge_index):
    """Pure-JAX reference mirroring the PyTorch forward."""
    row, col = edge_index[0], edge_index[1]
    feat = jnp.concatenate([z[row], z[col]], axis=1)            # (E, 2C)
    hid = jnp.maximum(feat @ params["w1"] + params["b1"], 0.0)  # (E, H)
    logit = hid @ params["w2"] + params["b2"]                   # (E, 1)
    return jax.nn.sigmoid(logit[:, 0])


if __name__ == "__main__":
    key = jax.random.PRNGKey(0)
    k_z, k_e1, k_e2, k_w1, k_b1, k_w2, k_b2 = jax.random.split(key, 7)

    num_nodes = 16
    in_channels = 32
    hidden_channels = 64
    num_edges = 40

    z = jax.random.normal(k_z, (num_nodes, in_channels), dtype=jnp.float32)
    edge_index = jnp.stack([
        jax.random.randint(k_e1, (num_edges,), 0, num_nodes, dtype=jnp.int32),
        jax.random.randint(k_e2, (num_edges,), 0, num_nodes, dtype=jnp.int32),
    ])

    params = {
        "w1": 0.1 * jax.random.normal(k_w1, (2 * in_channels, hidden_channels),
                                      dtype=jnp.float32),
        "b1": 0.1 * jax.random.normal(k_b1, (1, hidden_channels),
                                      dtype=jnp.float32),
        "w2": 0.1 * jax.random.normal(k_w2, (hidden_channels, 1),
                                      dtype=jnp.float32),
        "b2": 0.1 * jax.random.normal(k_b2, (1, 1), dtype=jnp.float32),
    }

    out = structure_decoder(params, z, edge_index)
    out = jax.block_until_ready(out)

    ref = _reference(params, z, edge_index)
    assert out.shape == (num_edges,)
    assert jnp.allclose(out, ref, atol=1e-5, rtol=1e-5)

    print("KERNEL_OK")
</pallas_src>

<mosaic_0001>
module attributes {stable_mosaic.version = 11 : i64} {
  func.func @_structure_decoder_kernel(%arg0: i32, %arg1: memref<1x128xi32, #tpu.memory_space<vmem>>, %arg2: memref<1x128xi32, #tpu.memory_space<vmem>>, %arg3: memref<32x16xf32, #tpu.memory_space<vmem>>, %arg4: memref<64x32xf32, #tpu.memory_space<vmem>>, %arg5: memref<64x32xf32, #tpu.memory_space<vmem>>, %arg6: memref<64x1xf32, #tpu.memory_space<vmem>>, %arg7: memref<64x1xf32, #tpu.memory_space<vmem>>, %arg8: memref<1x1xf32, #tpu.memory_space<vmem>>, %arg9: memref<1x128xf32, #tpu.memory_space<vmem>>) attributes {dimension_semantics = [#tpu.dimension_semantics<parallel>], iteration_bounds = array<i64: 1>, scalar_prefetch = 0 : i64, scratch_operands = 0 : i64, tpu.core_type = #tpu.core_type<tc>, window_params = [{transform_indices = @transform_0, window_bounds = array<i64: 1, 128>}, {transform_indices = @transform_1, window_bounds = array<i64: 1, 128>}, {pipeline_mode = #tpu.pipeline_mode<synchronous>, transform_indices = @transform_2, window_bounds = array<i64: 32, 16>}, {pipeline_mode = #tpu.pipeline_mode<synchronous>, transform_indices = @transform_3, window_bounds = array<i64: 64, 32>}, {pipeline_mode = #tpu.pipeline_mode<synchronous>, transform_indices = @transform_4, window_bounds = array<i64: 64, 32>}, {pipeline_mode = #tpu.pipeline_mode<synchronous>, transform_indices = @transform_5, window_bounds = array<i64: 64, 1>}, {pipeline_mode = #tpu.pipeline_mode<synchronous>, transform_indices = @transform_6, window_bounds = array<i64: 64, 1>}, {pipeline_mode = #tpu.pipeline_mode<synchronous>, transform_indices = @transform_7, window_bounds = array<i64: 1, 1>}, {transform_indices = @transform_8, window_bounds = array<i64: 1, 128>}]} {
    %0 = tpu.iota {dimensions = array<i32: 0>} : vector<16x128xi32>
    %c0 = arith.constant 0 : index
    %c0_0 = arith.constant 0 : index
    %1 = vector.load %arg1[%c0, %c0_0] : memref<1x128xi32, #tpu.memory_space<vmem>>, vector<1x128xi32>
    %2 = vector.broadcast %1 : vector<1x128xi32> to vector<16x128xi32>
    %3 = arith.cmpi eq, %2, %0 : vector<16x128xi32>
    %4 = arith.extui %3 : vector<16x128xi1> to vector<16x128xi32>
    %5 = arith.sitofp %4 : vector<16x128xi32> to vector<16x128xf32>
    %c0_1 = arith.constant 0 : index
    %c0_2 = arith.constant 0 : index
    %6 = vector.load %arg2[%c0_1, %c0_2] : memref<1x128xi32, #tpu.memory_space<vmem>>, vector<1x128xi32>
    %7 = vector.broadcast %6 : vector<1x128xi32> to vector<16x128xi32>
    %8 = arith.cmpi eq, %7, %0 : vector<16x128xi32>
    %9 = arith.extui %8 : vector<16x128xi1> to vector<16x128xi32>
    %10 = arith.sitofp %9 : vector<16x128xi32> to vector<16x128xf32>
    %c0_3 = arith.constant 0 : index
    %c0_4 = arith.constant 0 : index
    %11 = vector.load %arg3[%c0_3, %c0_4] : memref<32x16xf32, #tpu.memory_space<vmem>>, vector<32x16xf32>
    %cst = arith.constant dense<0.000000e+00> : vector<32x128xf32>
    %12 = tpu.matmul %11, %5, %cst {dimension_numbers = #tpu.dot_dimension_numbers<[1], [0], [0], [1], [0, 0, 1, 1], [], []>} : vector<32x16xf32>, vector<16x128xf32>, vector<32x128xf32> -> vector<32x128xf32>
    %cst_5 = arith.constant dense<0.000000e+00> : vector<32x128xf32>
    %13 = tpu.matmul %11, %10, %cst_5 {dimension_numbers = #tpu.dot_dimension_numbers<[1], [0], [0], [1], [0, 0, 1, 1], [], []>} : vector<32x16xf32>, vector<16x128xf32>, vector<32x128xf32> -> vector<32x128xf32>
    %c0_6 = arith.constant 0 : index
    %c0_7 = arith.constant 0 : index
    %14 = vector.load %arg4[%c0_6, %c0_7] : memref<64x32xf32, #tpu.memory_space<vmem>>, vector<64x32xf32>
    %cst_8 = arith.constant dense<0.000000e+00> : vector<64x128xf32>
    %15 = tpu.matmul %14, %12, %cst_8 {dimension_numbers = #tpu.dot_dimension_numbers<[1], [0], [0], [1], [0, 0, 1, 1], [], []>} : vector<64x32xf32>, vector<32x128xf32>, vector<64x128xf32> -> vector<64x128xf32>
    %c0_9 = arith.constant 0 : index
    %c0_10 = arith.constant 0 : index
    %16 = vector.load %arg5[%c0_9, %c0_10] : memref<64x32xf32, #tpu.memory_space<vmem>>, vector<64x32xf32>
    %cst_11 = arith.constant dense<0.000000e+00> : vector<64x128xf32>
    %17 = tpu.matmul %16, %13, %cst_11 {dimension_numbers = #tpu.dot_dimension_numbers<[1], [0], [0], [1], [0, 0, 1, 1], [], []>} : vector<64x32xf32>, vector<32x128xf32>, vector<64x128xf32> -> vector<64x128xf32>
    %18 = arith.addf %15, %17 : vector<64x128xf32>
    %c0_12 = arith.constant 0 : index
    %c0_13 = arith.constant 0 : index
    %19 = vector.load %arg6[%c0_12, %c0_13] : memref<64x1xf32, #tpu.memory_space<vmem>>, vector<64x1xf32>
    %20 = vector.broadcast %19 : vector<64x1xf32> to vector<64x128xf32>
    %21 = arith.addf %18, %20 : vector<64x128xf32>
    %cst_14 = arith.constant 0.000000e+00 : f32
    %22 = vector.broadcast %cst_14 : f32 to vector<64x128xf32>
    %23 = arith.maximumf %21, %22 : vector<64x128xf32>
    %c0_15 = arith.constant 0 : index
    %c0_16 = arith.constant 0 : index
    %24 = vector.load %arg7[%c0_15, %c0_16] : memref<64x1xf32, #tpu.memory_space<vmem>>, vector<64x1xf32>
    %25 = vector.broadcast %24 : vector<64x1xf32> to vector<64x128xf32>
    %26 = arith.mulf %23, %25 : vector<64x128xf32>
    %cst_17 = arith.constant dense<0.000000e+00> : vector<128xf32>
    %27 = vector.multi_reduction <add>, %26, %cst_17 [0] : vector<64x128xf32> to vector<128xf32>
    %28 = vector.shape_cast %27 : vector<128xf32> to vector<1x128xf32>
    %c0_18 = arith.constant 0 : index
    %c0_19 = arith.constant 0 : index
    %29 = vector.load %arg8[%c0_18, %c0_19] : memref<1x1xf32, #tpu.memory_space<vmem>>, vector<1x1xf32>
    %30 = vector.broadcast %29 : vector<1x1xf32> to vector<1x128xf32>
    %31 = arith.addf %28, %30 : vector<1x128xf32>
    %cst_20 = arith.constant 5.000000e-01 : f32
    %32 = vector.broadcast %cst_20 : f32 to vector<1x128xf32>
    %33 = arith.mulf %32, %31 : vector<1x128xf32>
    %34 = math.tanh %33 : vector<1x128xf32>
    %cst_21 = arith.constant 1.000000e+00 : f32
    %35 = vector.broadcast %cst_21 : f32 to vector<1x128xf32>
    %36 = arith.addf %34, %35 : vector<1x128xf32>
    %cst_22 = arith.constant 5.000000e-01 : f32
    %37 = vector.broadcast %cst_22 : f32 to vector<1x128xf32>
    %38 = arith.mulf %37, %36 : vector<1x128xf32>
    %c0_23 = arith.constant 0 : index
    %c0_24 = arith.constant 0 : index
    %39 = vector.load %arg9[%c0_23, %c0_24] : memref<1x128xf32, #tpu.memory_space<vmem>>, vector<1x128xf32>
    tpu.vector_store %arg9[%c0_23, %c0_24], %38 {strides = array<i32>} : memref<1x128xf32, #tpu.memory_space<vmem>>, vector<1x128xf32>,
    return
  }
  func.func @transform_0(%arg0: i32) -> (i32, i32) {
    %c0_i32 = arith.constant 0 : i32
    %c0_i32_0 = arith.constant 0 : i32
    return %c0_i32, %arg0 : i32, i32
  }
  func.func @transform_1(%arg0: i32) -> (i32, i32) {
    %c0_i32 = arith.constant 0 : i32
    %c0_i32_0 = arith.constant 0 : i32
    return %c0_i32, %arg0 : i32, i32
  }
  func.func @transform_2(%arg0: i32) -> (i32, i32) {
    %c0_i32 = arith.constant 0 : i32
    %c0_i32_0 = arith.constant 0 : i32
    %c0_i32_1 = arith.constant 0 : i32
    return %c0_i32, %c0_i32_0 : i32, i32
  }
  func.func @transform_3(%arg0: i32) -> (i32, i32) {
    %c0_i32 = arith.constant 0 : i32
    %c0_i32_0 = arith.constant 0 : i32
    %c0_i32_1 = arith.constant 0 : i32
    return %c0_i32, %c0_i32_0 : i32, i32
  }
  func.func @transform_4(%arg0: i32) -> (i32, i32) {
    %c0_i32 = arith.constant 0 : i32
    %c0_i32_0 = arith.constant 0 : i32
    %c0_i32_1 = arith.constant 0 : i32
    return %c0_i32, %c0_i32_0 : i32, i32
  }
  func.func @transform_5(%arg0: i32) -> (i32, i32) {
    %c0_i32 = arith.constant 0 : i32
    %c0_i32_0 = arith.constant 0 : i32
    %c0_i32_1 = arith.constant 0 : i32
    return %c0_i32, %c0_i32_0 : i32, i32
  }
  func.func @transform_6(%arg0: i32) -> (i32, i32) {
    %c0_i32 = arith.constant 0 : i32
    %c0_i32_0 = arith.constant 0 : i32
    %c0_i32_1 = arith.constant 0 : i32
    return %c0_i32, %c0_i32_0 : i32, i32
  }
  func.func @transform_7(%arg0: i32) -> (i32, i32) {
    %c0_i32 = arith.constant 0 : i32
    %c0_i32_0 = arith.constant 0 : i32
    %c0_i32_1 = arith.constant 0 : i32
    return %c0_i32, %c0_i32_0 : i32, i32
  }
  func.func @transform_8(%arg0: i32) -> (i32, i32) {
    %c0_i32 = arith.constant 0 : i32
    %c0_i32_0 = arith.constant 0 : i32
    return %c0_i32, %arg0 : i32, i32
  }
}

</mosaic_0001>

<llo_original>
// kernel: tpu_custom_call.1
$region0: #{tpu_custom_call.1}
  #allocation0 [shape = 'u32[]', space=smem, size = 0x4, offset = 0x4, fixed_abs, tag = 'smem constant byte address 0x4 - core index']
  #allocation1 [shape = 'u32[144,128]{1,0:T(1,128)}', space=vmem, size = 0x12000, scoped, tag = 'internal scratch']
  #allocation2 [shape = 'f32[1,1]{1,0:T(1,128)S(1)}', space=vmem, size = 0x200, scoped, tag = 'scoped memory for tpu_custom_call.1']
  %s0 = inlined_call_operand.vmem [shape: s32[1,128], index: 0, kind: input, shape index: {}]
  %s1 = inlined_call_operand.vmem [shape: s32[1,128], index: 1, kind: input, shape index: {}]
  %s2 = inlined_call_operand.vmem [shape: f32[32,16], index: 2, kind: input, shape index: {}]
  %s3 = inlined_call_operand.vmem [shape: f32[64,32], index: 3, kind: input, shape index: {}]
  %s4 = inlined_call_operand.vmem [shape: f32[64,32], index: 4, kind: input, shape index: {}]
  %s5 = inlined_call_operand.vmem [shape: f32[64,1], index: 5, kind: input, shape index: {}]
  %s6 = inlined_call_operand.vmem [shape: f32[64,1], index: 6, kind: input, shape index: {}]
  %s7 = inlined_call_operand.<no memory space> [shape: f32[1,1], index: 7, kind: input, shape index: {}]
  %s8 = inlined_call_operand.hbm [shape: f32[1,128], index: 8, kind: output, shape index: {}]
  %s9 = sld [smem:[#allocation0]]
  $region42: #{tpu_custom_call.1} parent=0
    _
  %s11 = ssub.s32 1, %s9
  %s12 = scalar_select 0, %s11, %s9
  %v13 = vstv %s7
  %14 = vst [vmem:[#allocation2] sm:$0x1] %v13
  $region1: #{tpu_custom_call.1} parent=0
    #allocation3 [shape = 'u8[512]{0}', space=vmem, size = 0x400, scoped, tag = 'output window, operand 0, single buffered']
    #allocation4 [shape = 's32[1]{0}', space=sflag, size = 0x4, scoped, tag = 'scoped memory for tpu_custom_call.1']
    %15 = vsyncpa [#allocation4], 0
    // Predicated region
    $region2: #{tpu_custom_call.1} parent=1 // pred_check
      _
    $region3: #{tpu_custom_call.1} parent=1 // pred_check_branch
      %17 = sbr.rel (0) target = $region5
    $region4: #{tpu_custom_call.1} parent=1 // pred_region
      _
    $region5: #{tpu_custom_call.1} parent=1 // pred_fallthru
      _
    // Predicated region
    $region6: #{tpu_custom_call.1} parent=1 // pred_check
      _
    $region7: #{tpu_custom_call.1} parent=1 // pred_check_branch
      %19 = sbr.rel (0) target = $region9
    $region8: #{tpu_custom_call.1} parent=1 // pred_region
      _
    $region9: #{tpu_custom_call.1} parent=1 // pred_fallthru
      _
    // Predicated region
    $region10: #{tpu_custom_call.1} parent=1 // pred_check
      _
    $region11: #{tpu_custom_call.1} parent=1 // pred_check_branch
      %21 = sbr.rel (0) target = $region13
    $region12: #{tpu_custom_call.1} parent=1 // pred_region
      _
    $region13: #{tpu_custom_call.1} parent=1 // pred_fallthru
      _
    // Predicated region
    $region14: #{tpu_custom_call.1} parent=1 // pred_check
      _
    $region15: #{tpu_custom_call.1} parent=1 // pred_check_branch
      %23 = sbr.rel (0) target = $region17
    $region16: #{tpu_custom_call.1} parent=1 // pred_region
      _
    $region17: #{tpu_custom_call.1} parent=1 // pred_fallthru
      _
    // Predicated region
    $region18: #{tpu_custom_call.1} parent=1 // pred_check
      _
    $region19: #{tpu_custom_call.1} parent=1 // pred_check_branch
      %25 = sbr.rel (0) target = $region21
    $region20: #{tpu_custom_call.1} parent=1 // pred_region
      _
    $region21: #{tpu_custom_call.1} parent=1 // pred_fallthru
      _
    // Predicated region
    $region22: #{tpu_custom_call.1} parent=1 // pred_check
      _
    $region23: #{tpu_custom_call.1} parent=1 // pred_check_branch
      %27 = sbr.rel (0) target = $region25
    $region24: #{tpu_custom_call.1} parent=1 // pred_region
      _
    $region25: #{tpu_custom_call.1} parent=1 // pred_fallthru
      _
    // Predicated region
    $region26: #{tpu_custom_call.1} parent=1 // pred_check
      _
    $region27: #{tpu_custom_call.1} parent=1 // pred_check_branch
      %29 = sbr.rel (0) target = $region29
    $region28: #{tpu_custom_call.1} parent=1 // pred_region
      _
    $region29: #{tpu_custom_call.1} parent=1 // pred_fallthru
      _
    // Predicated region
    $region30: #{tpu_custom_call.1} parent=1 // pred_check
      _
    $region31: #{tpu_custom_call.1} parent=1 // pred_check_branch
      %31 = sbr.rel (0) target = $region33
    $region32: #{tpu_custom_call.1} parent=1 // pred_region
      _
    $region33: #{tpu_custom_call.1} parent=1 // pred_fallthru
      _
    %v32 = vlaneseq
    %v33 = vshrl.u32 %v32, 7
    %v34 = vadd.s32 %v33, 8
    %v35 = vld [vmem:[%s0] sm:$0x1]
    %v36 = vlaneseq
    %v37 = vshrl.u32 %v36, 7
    %v38 = vsub.s32 0, %v37
    %v39 = vrot.slane %v35, %v38
    %vm40 = vcmp.eq.s32.totalorder %v39, %v33
    %vm41 = vcmp.eq.s32.totalorder %v39, %v34
    %v42 = vsel %vm40, 1, 0
    %v43 = vsel %vm41, 1, 0
    %v44 = vcvt.s32.f32 %v42
    %v45 = vcvt.s32.f32 %v43
    %v46 = vld [vmem:[%s1] sm:$0x1]
    %v47 = vlaneseq
    %v48 = vshrl.u32 %v47, 7
    %v49 = vsub.s32 0, %v48
    %v50 = vrot.slane %v46, %v49
    %vm51 = vcmp.eq.s32.totalorder %v50, %v33
    %vm52 = vcmp.eq.s32.totalorder %v50, %v34
    %v53 = vsel %vm51, 1, 0
    %v54 = vsel %vm52, 1, 0
    %v55 = vcvt.s32.f32 %v53
    %v56 = vcvt.s32.f32 %v54
    %v57 = vld [vmem:[%s2] sm:$0xff]
    %v58 = vld [vmem:[%s2 + $0x8] sm:$0xff]
    %v59 = vld [vmem:[%s2 + $0x10] sm:$0xff]
    %v60 = vld [vmem:[%s2 + $0x18] sm:$0xff]
    %vm61 = vcmask 130048
    %v63 = vsel %vm61, %v57, 0
    %v66 = vsel %vm61, %v58, 0
    %v69 = vsel %vm61, %v59, 0
    %v72 = vsel %vm61, %v60, 0
    %74 = vmatprep.subr.mxu0 0.0
    %75 = vmatpush1.msra.mxu0 %v44
    %76 = vmatprep.subr.mxu0 0.0
    %77 = vmatpush1.msra.mxu0 %v45
    %78 = vmatprep.subr.mxu0 0.0
    %79 = vmatpush1.msra.mxu0 0.0
    %80 = vmatprep.subr.mxu0 0.0
    %81 = vmatpush1.msra.mxu0 0.0
    %82 = vmatprep.subr.mxu0 0.0
    %83 = vmatpush1.msra.mxu0 0.0
    %84 = vmatprep.subr.mxu0 0.0
    %85 = vmatpush1.msra.mxu0 0.0
    %86 = vmatprep.subr.mxu0 0.0
    %87 = vmatpush1.msra.mxu0 0.0
    %88 = vmatprep.subr.mxu0 0.0
    %89 = vmatpush1.msra.mxu0 0.0
    %90 = vmatprep.subr.mxu0 0.0
    %91 = vmatpush1.msra.mxu0 0.0
    %92 = vmatprep.subr.mxu0 0.0
    %93 = vmatpush1.msra.mxu0 0.0
    %94 = vmatprep.subr.mxu0 0.0
    %95 = vmatpush1.msra.mxu0 0.0
    %96 = vmatprep.subr.mxu0 0.0
    %97 = vmatpush1.msra.mxu0 0.0
    %98 = vmatprep.subr.mxu0 0.0
    %99 = vmatpush1.msra.mxu0 0.0
    %100 = vmatprep.subr.mxu0 0.0
    %101 = vmatpush1.msra.mxu0 0.0
    %102 = vmatprep.subr.mxu0 0.0
    %103 = vmatpush1.msra.mxu0 0.0
    %104 = vmatprep.subr.mxu0 0.0
    %105 = vmatpush1.msra.mxu0 0.0
    %106 = vmatprep.subr.mxu0 0.0
    %107 = vmatpush1.msra.mxu0 0.0
    %108 = vmatprep.subr.mxu0 0.0
    %109 = vmatpush1.msra.mxu0 0.0
    %110 = vmatprep.subr.mxu0 0.0
    %111 = vmatpush1.msra.mxu0 0.0
    %112 = vmatprep.subr.mxu0 0.0
    %113 = vmatpush1.msra.mxu0 0.0
    %114 = vmatprep.subr.mxu0 0.0
    %115 = vmatpush1.msra.mxu0 0.0
    %116 = vmatprep.subr.mxu0 0.0
    %117 = vmatpush1.msra.mxu0 0.0
    %118 = vmatprep.subr.mxu0 0.0
    %119 = vmatpush1.msra.mxu0 0.0
    %120 = vmatprep.subr.mxu0 0.0
    %121 = vmatpush1.msra.mxu0 0.0
    %122 = vmatprep.subr.mxu0 0.0
    %123 = vmatpush1.msra.mxu0 0.0
    %124 = vmatprep.subr.mxu0 0.0
    %125 = vmatpush1.msra.mxu0 0.0
    %126 = vmatprep.subr.mxu0 0.0
    %127 = vmatpush1.msra.mxu0 0.0
    %128 = vmatprep.subr.mxu0 0.0
    %129 = vmatpush1.msra.mxu0 0.0
    %130 = vmatprep.subr.mxu0 0.0
    %131 = vmatpush1.msra.mxu0 0.0
    %132 = vmatprep.subr.mxu0 0.0
    %133 = vmatpush1.msra.mxu0 0.0
    %134 = vmatprep.subr.mxu0 0.0
    %135 = vmatpush1.msra.mxu0 0.0
    %136 = vmatprep.subr.mxu0 0.0
    %137 = vmatpush1.msra.mxu0 0.0
    %138 = vmatprep.mubr.f32.mxu0 0.0
    %139 = vmatmul.mubr.f32.gmra.mrb[0].mxu0 %v63
    %v140 = vpop.f32.mrb[0].mxu0
    %v141 = vadd.f32 0.0, %v140
    %v142 = vpop.f32.mrb[0].mxu0
    %143 = vmatprep.mubr.f32.mxu0 0.0
    %144 = vmatmul.mubr.f32.gmra.mrb[0].mxu0 %v66
    %v145 = vpop.f32.mrb[0].mxu0
    %v146 = vadd.f32 0.0, %v145
    %v147 = vpop.f32.mrb[0].mxu0
    %148 = vmatprep.mubr.f32.mxu0 0.0
    %149 = vmatmul.mubr.f32.gmra.mrb[0].mxu0 %v69
    %v150 = vpop.f32.mrb[0].mxu0
    %v151 = vadd.f32 0.0, %v150
    %v152 = vpop.f32.mrb[0].mxu0
    %153 = vmatprep.mubr.f32.mxu0 0.0
    %154 = vmatmul.mubr.f32.gmra.mrb[0].mxu0 %v72
    %v155 = vpop.f32.mrb[0].mxu0
    %v156 = vadd.f32 0.0, %v155
    %v157 = vpop.f32.mrb[0].mxu0
    %158 = vdwg.mxu0
    %159 = vmatprep.subr.mxu0 0.0
    %160 = vmatpush1.msra.mxu0 %v55
    %161 = vmatprep.subr.mxu0 0.0
    %162 = vmatpush1.msra.mxu0 %v56
    %163 = vmatprep.subr.mxu0 0.0
    %164 = vmatpush1.msra.mxu0 0.0
    %165 = vmatprep.subr.mxu0 0.0
    %166 = vmatpush1.msra.mxu0 0.0
    %167 = vmatprep.subr.mxu0 0.0
    %168 = vmatpush1.msra.mxu0 0.0
    %169 = vmatprep.subr.mxu0 0.0
    %170 = vmatpush1.msra.mxu0 0.0
    %171 = vmatprep.subr.mxu0 0.0
    %172 = vmatpush1.msra.mxu0 0.0
    %173 = vmatprep.subr.mxu0 0.0
    %174 = vmatpush1.msra.mxu0 0.0
    %175 = vmatprep.subr.mxu0 0.0
    %176 = vmatpush1.msra.mxu0 0.0
    %177 = vmatprep.subr.mxu0 0.0
    %178 = vmatpush1.msra.mxu0 0.0
    %179 = vmatprep.subr.mxu0 0.0
    %180 = vmatpush1.msra.mxu0 0.0
    %181 = vmatprep.subr.mxu0 0.0
    %182 = vmatpush1.msra.mxu0 0.0
    %183 = vmatprep.subr.mxu0 0.0
    %184 = vmatpush1.msra.mxu0 0.0
    %185 = vmatprep.subr.mxu0 0.0
    %186 = vmatpush1.msra.mxu0 0.0
    %187 = vmatprep.subr.mxu0 0.0
    %188 = vmatpush1.msra.mxu0 0.0
    %189 = vmatprep.subr.mxu0 0.0
    %190 = vmatpush1.msra.mxu0 0.0
    %191 = vmatprep.subr.mxu0 0.0
    %192 = vmatpush1.msra.mxu0 0.0
    %193 = vmatprep.subr.mxu0 0.0
    %194 = vmatpush1.msra.mxu0 0.0
    %195 = vmatprep.subr.mxu0 0.0
    %196 = vmatpush1.msra.mxu0 0.0
    %197 = vmatprep.subr.mxu0 0.0
    %198 = vmatpush1.msra.mxu0 0.0
    %199 = vmatprep.subr.mxu0 0.0
    %200 = vmatpush1.msra.mxu0 0.0
    %201 = vmatprep.subr.mxu0 0.0
    %202 = vmatpush1.msra.mxu0 0.0
    %203 = vmatprep.subr.mxu0 0.0
    %204 = vmatpush1.msra.mxu0 0.0
    %205 = vmatprep.subr.mxu0 0.0
    %206 = vmatpush1.msra.mxu0 0.0
    %207 = vmatprep.subr.mxu0 0.0
    %208 = vmatpush1.msra.mxu0 0.0
    %209 = vmatprep.subr.mxu0 0.0
    %210 = vmatpush1.msra.mxu0 0.0
    %211 = vmatprep.subr.mxu0 0.0
    %212 = vmatpush1.msra.mxu0 0.0
    %213 = vmatprep.subr.mxu0 0.0
    %214 = vmatpush1.msra.mxu0 0.0
    %215 = vmatprep.subr.mxu0 0.0
    %216 = vmatpush1.msra.mxu0 0.0
    %217 = vmatprep.subr.mxu0 0.0
    %218 = vmatpush1.msra.mxu0 0.0
    %219 = vmatprep.subr.mxu0 0.0
    %220 = vmatpush1.msra.mxu0 0.0
    %221 = vmatprep.subr.mxu0 0.0
    %222 = vmatpush1.msra.mxu0 0.0
    %223 = vmatprep.mubr.f32.mxu0 0.0
    %224 = vmatmul.mubr.f32.gmra.mrb[0].mxu0 %v63
    %v225 = vpop.f32.mrb[0].mxu0
    %v226 = vadd.f32 0.0, %v225
    %v227 = vpop.f32.mrb[0].mxu0
    %228 = vmatprep.mubr.f32.mxu0 0.0
    %229 = vmatmul.mubr.f32.gmra.mrb[0].mxu0 %v66
    %v230 = vpop.f32.mrb[0].mxu0
    %v231 = vadd.f32 0.0, %v230
    %v232 = vpop.f32.mrb[0].mxu0
    %233 = vmatprep.mubr.f32.mxu0 0.0
    %234 = vmatmul.mubr.f32.gmra.mrb[0].mxu0 %v69
    %v235 = vpop.f32.mrb[0].mxu0
    %v236 = vadd.f32 0.0, %v235
    %v237 = vpop.f32.mrb[0].mxu0
    %238 = vmatprep.mubr.f32.mxu0 0.0
    %239 = vmatmul.mubr.f32.gmra.mrb[0].mxu0 %v72
    %v240 = vpop.f32.mrb[0].mxu0
    %v241 = vadd.f32 0.0, %v240
    %v242 = vpop.f32.mrb[0].mxu0
    %243 = vdwg.mxu0
    %v244 = vld [vmem:[%s3] sm:$0xff]
    %v245 = vld [vmem:[%s3 + $0x8] sm:$0xff]
    %v246 = vld [vmem:[%s3 + $0x10] sm:$0xff]
    %v247 = vld [vmem:[%s3 + $0x18] sm:$0xff]
    %v248 = vld [vmem:[%s3 + $0x20] sm:$0xff]
    %v249 = vld [vmem:[%s3 + $0x28] sm:$0xff]
    %v250 = vld [vmem:[%s3 + $0x30] sm:$0xff]
    %v251 = vld [vmem:[%s3 + $0x38] sm:$0xff]
    %v252 = vld [vmem:[%s4] sm:$0xff]
    %v253 = vld [vmem:[%s4 + $0x8] sm:$0xff]
    %v254 = vld [vmem:[%s4 + $0x10] sm:$0xff]
    %v255 = vld [vmem:[%s4 + $0x18] sm:$0xff]
    %v256 = vld [vmem:[%s4 + $0x20] sm:$0xff]
    %v257 = vld [vmem:[%s4 + $0x28] sm:$0xff]
    %v258 = vld [vmem:[%s4 + $0x30] sm:$0xff]
    %v259 = vld [vmem:[%s4 + $0x38] sm:$0xff]
    %vm260 = vcmask 261120
    %v262 = vsel %vm260, %v252, 0
    %v265 = vsel %vm260, %v253, 0
    %v268 = vsel %vm260, %v254, 0
    %v271 = vsel %vm260, %v255, 0
    %v274 = vsel %vm260, %v256, 0
    %v277 = vsel %vm260, %v257, 0
    %v280 = vsel %vm260, %v258, 0
    %v283 = vsel %vm260, %v259, 0
    %285 = vmatprep.subr.mxu0 0.0
    %286 = vmatpush1.msra.mxu0 %v226
    %287 = vmatprep.subr.mxu0 0.0
    %288 = vmatpush1.msra.mxu0 %v231
    %289 = vmatprep.subr.mxu0 0.0
    %290 = vmatpush1.msra.mxu0 %v236
    %291 = vmatprep.subr.mxu0 0.0
    %292 = vmatpush1.msra.mxu0 %v241
    %293 = vmatprep.subr.mxu0 0.0
    %294 = vmatpush1.msra.mxu0 0.0
    %295 = vmatprep.subr.mxu0 0.0
    %296 = vmatpush1.msra.mxu0 0.0
    %297 = vmatprep.subr.mxu0 0.0
    %298 = vmatpush1.msra.mxu0 0.0
    %299 = vmatprep.subr.mxu0 0.0
    %300 = vmatpush1.msra.mxu0 0.0
    %301 = vmatprep.subr.mxu0 0.0
    %302 = vmatpush1.msra.mxu0 0.0
    %303 = vmatprep.subr.mxu0 0.0
    %304 = vmatpush1.msra.mxu0 0.0
    %305 = vmatprep.subr.mxu0 0.0
    %306 = vmatpush1.msra.mxu0 0.0
    %307 = vmatprep.subr.mxu0 0.0
    %308 = vmatpush1.msra.mxu0 0.0
    %309 = vmatprep.subr.mxu0 0.0
    %310 = vmatpush1.msra.mxu0 0.0
    %311 = vmatprep.subr.mxu0 0.0
    %312 = vmatpush1.msra.mxu0 0.0
    %313 = vmatprep.subr.mxu0 0.0
    %314 = vmatpush1.msra.mxu0 0.0
    %315 = vmatprep.subr.mxu0 0.0
    %316 = vmatpush1.msra.mxu0 0.0
    %317 = vmatprep.subr.mxu0 0.0
    %318 = vmatpush1.msra.mxu0 0.0
    %319 = vmatprep.subr.mxu0 0.0
    %320 = vmatpush1.msra.mxu0 0.0
    %321 = vmatprep.subr.mxu0 0.0
    %322 = vmatpush1.msra.mxu0 0.0
    %323 = vmatprep.subr.mxu0 0.0
    %324 = vmatpush1.msra.mxu0 0.0
    %325 = vmatprep.subr.mxu0 0.0
    %326 = vmatpush1.msra.mxu0 0.0
    %327 = vmatprep.subr.mxu0 0.0
    %328 = vmatpush1.msra.mxu0 0.0
    %329 = vmatprep.subr.mxu0 0.0
    %330 = vmatpush1.msra.mxu0 0.0
    %331 = vmatprep.subr.mxu0 0.0
    %332 = vmatpush1.msra.mxu0 0.0
    %333 = vmatprep.subr.mxu0 0.0
    %334 = vmatpush1.msra.mxu0 0.0
    %335 = vmatprep.subr.mxu0 0.0
    %336 = vmatpush1.msra.mxu0 0.0
    %337 = vmatprep.subr.mxu0 0.0
    %338 = vmatpush1.msra.mxu0 0.0
    %339 = vmatprep.subr.mxu0 0.0
    %340 = vmatpush1.msra.mxu0 0.0
    %341 = vmatprep.subr.mxu0 0.0
    %342 = vmatpush1.msra.mxu0 0.0
    %343 = vmatprep.subr.mxu0 0.0
    %344 = vmatpush1.msra.mxu0 0.0
    %345 = vmatprep.subr.mxu0 0.0
    %346 = vmatpush1.msra.mxu0 0.0
    %347 = vmatprep.subr.mxu0 0.0
    %348 = vmatpush1.msra.mxu0 0.0
    %349 = vmatprep.mubr.f32.mxu0 0.0
    %350 = vmatmul.mubr.f32.gmra.mrb[0].mxu0 %v262
    %v351 = vpop.f32.mrb[0].mxu0
    %v352 = vadd.f32 0.0, %v351
    %v353 = vpop.f32.mrb[0].mxu0
    %354 = vmatprep.mubr.f32.mxu0 0.0
    %355 = vmatmul.mubr.f32.gmra.mrb[0].mxu0 %v265
    %v356 = vpop.f32.mrb[0].mxu0
    %v357 = vadd.f32 0.0, %v356
    %v358 = vpop.f32.mrb[0].mxu0
    %359 = vmatprep.mubr.f32.mxu0 0.0
    %360 = vmatmul.mubr.f32.gmra.mrb[0].mxu0 %v268
    %v361 = vpop.f32.mrb[0].mxu0
    %v362 = vadd.f32 0.0, %v361
    %v363 = vpop.f32.mrb[0].mxu0
    %364 = vmatprep.mubr.f32.mxu0 0.0
    %365 = vmatmul.mubr.f32.gmra.mrb[0].mxu0 %v271
    %v366 = vpop.f32.mrb[0].mxu0
    %v367 = vadd.f32 0.0, %v366
    %v368 = vpop.f32.mrb[0].mxu0
    %369 = vmatprep.mubr.f32.mxu0 0.0
    %370 = vmatmul.mubr.f32.gmra.mrb[0].mxu0 %v274
    %v371 = vpop.f32.mrb[0].mxu0
    %v372 = vadd.f32 0.0, %v371
    %v373 = vpop.f32.mrb[0].mxu0
    %374 = vmatprep.mubr.f32.mxu0 0.0
    %375 = vmatmul.mubr.f32.gmra.mrb[0].mxu0 %v277
    %v376 = vpop.f32.mrb[0].mxu0
    %v377 = vadd.f32 0.0, %v376
    %v378 = vpop.f32.mrb[0].mxu0
    %379 = vmatprep.mubr.f32.mxu0 0.0
    %380 = vmatmul.mubr.f32.gmra.mrb[0].mxu0 %v280
    %v381 = vpop.f32.mrb[0].mxu0
    %v382 = vadd.f32 0.0, %v381
    %v383 = vpop.f32.mrb[0].mxu0
    %384 = vmatprep.mubr.f32.mxu0 0.0
    %385 = vmatmul.mubr.f32.gmra.mrb[0].mxu0 %v283
    %v386 = vpop.f32.mrb[0].mxu0
    %v387 = vadd.f32 0.0, %v386
    %v388 = vpop.f32.mrb[0].mxu0
    %389 = vdwg.mxu0
    %v391 = vsel %vm260, %v244, 0
    %v394 = vsel %vm260, %v245, 0
    %v397 = vsel %vm260, %v246, 0
    %v400 = vsel %vm260, %v247, 0
    %v403 = vsel %vm260, %v248, 0
    %v406 = vsel %vm260, %v249, 0
    %v409 = vsel %vm260, %v250, 0
    %v412 = vsel %vm260, %v251, 0
    %414 = vmatprep.subr.mxu0 0.0
    %415 = vmatpush1.msra.mxu0 %v141
    %416 = vmatprep.subr.mxu0 0.0
    %417 = vmatpush1.msra.mxu0 %v146
    %418 = vmatprep.subr.mxu0 0.0
    %419 = vmatpush1.msra.mxu0 %v151
    %420 = vmatprep.subr.mxu0 0.0
    %421 = vmatpush1.msra.mxu0 %v156
    %422 = vmatprep.subr.mxu0 0.0
    %423 = vmatpush1.msra.mxu0 0.0
    %424 = vmatprep.subr.mxu0 0.0
    %425 = vmatpush1.msra.mxu0 0.0
    %426 = vmatprep.subr.mxu0 0.0
    %427 = vmatpush1.msra.mxu0 0.0
    %428 = vmatprep.subr.mxu0 0.0
    %429 = vmatpush1.msra.mxu0 0.0
    %430 = vmatprep.subr.mxu0 0.0
    %431 = vmatpush1.msra.mxu0 0.0
    %432 = vmatprep.subr.mxu0 0.0
    %433 = vmatpush1.msra.mxu0 0.0
    %434 = vmatprep.subr.mxu0 0.0
    %435 = vmatpush1.msra.mxu0 0.0
    %436 = vmatprep.subr.mxu0 0.0
    %437 = vmatpush1.msra.mxu0 0.0
    %438 = vmatprep.subr.mxu0 0.0
    %439 = vmatpush1.msra.mxu0 0.0
    %440 = vmatprep.subr.mxu0 0.0
    %441 = vmatpush1.msra.mxu0 0.0
    %442 = vmatprep.subr.mxu0 0.0
    %443 = vmatpush1.msra.mxu0 0.0
    %444 = vmatprep.subr.mxu0 0.0
    %445 = vmatpush1.msra.mxu0 0.0
    %446 = vmatprep.subr.mxu0 0.0
    %447 = vmatpush1.msra.mxu0 0.0
    %448 = vmatprep.subr.mxu0 0.0
    %449 = vmatpush1.msra.mxu0 0.0
    %450 = vmatprep.subr.mxu0 0.0
    %451 = vmatpush1.msra.mxu0 0.0
    %452 = vmatprep.subr.mxu0 0.0
    %453 = vmatpush1.msra.mxu0 0.0
    %454 = vmatprep.subr.mxu0 0.0
    %455 = vmatpush1.msra.mxu0 0.0
    %456 = vmatprep.subr.mxu0 0.0
    %457 = vmatpush1.msra.mxu0 0.0
    %458 = vmatprep.subr.mxu0 0.0
    %459 = vmatpush1.msra.mxu0 0.0
    %460 = vmatprep.subr.mxu0 0.0
    %461 = vmatpush1.msra.mxu0 0.0
    %462 = vmatprep.subr.mxu0 0.0
    %463 = vmatpush1.msra.mxu0 0.0
    %464 = vmatprep.subr.mxu0 0.0
    %465 = vmatpush1.msra.mxu0 0.0
    %466 = vmatprep.subr.mxu0 0.0
    %467 = vmatpush1.msra.mxu0 0.0
    %468 = vmatprep.subr.mxu0 0.0
    %469 = vmatpush1.msra.mxu0 0.0
    %470 = vmatprep.subr.mxu0 0.0
    %471 = vmatpush1.msra.mxu0 0.0
    %472 = vmatprep.subr.mxu0 0.0
    %473 = vmatpush1.msra.mxu0 0.0
    %474 = vmatprep.subr.mxu0 0.0
    %475 = vmatpush1.msra.mxu0 0.0
    %476 = vmatprep.subr.mxu0 0.0
    %477 = vmatpush1.msra.mxu0 0.0
    %478 = vmatprep.mubr.f32.mxu0 0.0
    %479 = vmatmul.mubr.f32.gmra.mrb[0].mxu0 %v391
    %v480 = vpop.f32.mrb[0].mxu0
    %v481 = vadd.f32 %v352, %v480
    %v482 = vpop.f32.mrb[0].mxu0
    %483 = vmatprep.mubr.f32.mxu0 0.0
    %484 = vmatmul.mubr.f32.gmra.mrb[0].mxu0 %v394
    %v485 = vpop.f32.mrb[0].mxu0
    %v486 = vadd.f32 %v357, %v485
    %v487 = vpop.f32.mrb[0].mxu0
    %488 = vmatprep.mubr.f32.mxu0 0.0
    %489 = vmatmul.mubr.f32.gmra.mrb[0].mxu0 %v397
    %v490 = vpop.f32.mrb[0].mxu0
    %v491 = vadd.f32 %v362, %v490
    %v492 = vpop.f32.mrb[0].mxu0
    %493 = vmatprep.mubr.f32.mxu0 0.0
    %494 = vmatmul.mubr.f32.gmra.mrb[0].mxu0 %v400
    %v495 = vpop.f32.mrb[0].mxu0
    %v496 = vadd.f32 %v367, %v495
    %v497 = vpop.f32.mrb[0].mxu0
    %498 = vmatprep.mubr.f32.mxu0 0.0
    %499 = vmatmul.mubr.f32.gmra.mrb[0].mxu0 %v403
    %v500 = vpop.f32.mrb[0].mxu0
    %v501 = vadd.f32 %v372, %v500
    %v502 = vpop.f32.mrb[0].mxu0
    %503 = vmatprep.mubr.f32.mxu0 0.0
    %504 = vmatmul.mubr.f32.gmra.mrb[0].mxu0 %v406
    %v505 = vpop.f32.mrb[0].mxu0
    %v506 = vadd.f32 %v377, %v505
    %v507 = vpop.f32.mrb[0].mxu0
    %508 = vmatprep.mubr.f32.mxu0 0.0
    %509 = vmatmul.mubr.f32.gmra.mrb[0].mxu0 %v409
    %v510 = vpop.f32.mrb[0].mxu0
    %v511 = vadd.f32 %v382, %v510
    %v512 = vpop.f32.mrb[0].mxu0
    %513 = vmatprep.mubr.f32.mxu0 0.0
    %514 = vmatmul.mubr.f32.gmra.mrb[0].mxu0 %v412
    %v515 = vpop.f32.mrb[0].mxu0
    %v516 = vadd.f32 %v387, %v515
    %v517 = vpop.f32.mrb[0].mxu0
    %518 = vdwg.mxu0
    %v519 = vld [vmem:[%s5] sm:$0xff]
    %v520 = vld [vmem:[%s5 + $0x8] sm:$0xff]
    %v521 = vld [vmem:[%s5 + $0x10] sm:$0xff]
    %v522 = vld [vmem:[%s5 + $0x18] sm:$0xff]
    %v523 = vld [vmem:[%s5 + $0x20] sm:$0xff]
    %v524 = vld [vmem:[%s5 + $0x28] sm:$0xff]
    %v525 = vld [vmem:[%s5 + $0x30] sm:$0xff]
    %v526 = vld [vmem:[%s5 + $0x38] sm:$0xff]
    %528 = vset.pattern.permute.xlu0 0
    %529 = vperm.xlu0 %528, %v519
    %v530 = vpop.permute.xlu0 %529
    %533 = vset.pattern.permute.xlu0 0
    %534 = vperm.xlu0 %533, %v520
    %v535 = vpop.permute.xlu0 %534
    %538 = vset.pattern.permute.xlu0 0
    %539 = vperm.xlu0 %538, %v521
    %v540 = vpop.permute.xlu0 %539
    %543 = vset.pattern.permute.xlu0 0
    %544 = vperm.xlu0 %543, %v522
    %v545 = vpop.permute.xlu0 %544
    %548 = vset.pattern.permute.xlu0 0
    %549 = vperm.xlu0 %548, %v523
    %v550 = vpop.permute.xlu0 %549
    %553 = vset.pattern.permute.xlu0 0
    %554 = vperm.xlu0 %553, %v524
    %v555 = vpop.permute.xlu0 %554
    %558 = vset.pattern.permute.xlu0 0
    %559 = vperm.xlu0 %558, %v525
    %v560 = vpop.permute.xlu0 %559
    %563 = vset.pattern.permute.xlu0 0
    %564 = vperm.xlu0 %563, %v526
    %v565 = vpop.permute.xlu0 %564
    %v567 = vadd.f32 %v481, %v530
    %v568 = vadd.f32 %v486, %v535
    %v569 = vadd.f32 %v491, %v540
    %v570 = vadd.f32 %v496, %v545
    %v571 = vadd.f32 %v501, %v550
    %v572 = vadd.f32 %v506, %v555
    %v573 = vadd.f32 %v511, %v560
    %v574 = vadd.f32 %v516, %v565
    %v575 = vmax.f32 %v567, 0.0
    %v576 = vmax.f32 %v568, 0.0
    %v577 = vmax.f32 %v569, 0.0
    %v578 = vmax.f32 %v570, 0.0
    %v579 = vmax.f32 %v571, 0.0
    %v580 = vmax.f32 %v572, 0.0
    %v581 = vmax.f32 %v573, 0.0
    %v582 = vmax.f32 %v574, 0.0
    %v583 = vld [vmem:[%s6] sm:$0xff]
    %v584 = vld [vmem:[%s6 + $0x8] sm:$0xff]
    %v585 = vld [vmem:[%s6 + $0x10] sm:$0xff]
    %v586 = vld [vmem:[%s6 + $0x18] sm:$0xff]
    %v587 = vld [vmem:[%s6 + $0x20] sm:$0xff]
    %v588 = vld [vmem:[%s6 + $0x28] sm:$0xff]
    %v589 = vld [vmem:[%s6 + $0x30] sm:$0xff]
    %v590 = vld [vmem:[%s6 + $0x38] sm:$0xff]
    %592 = vset.pattern.permute.xlu0 0
    %593 = vperm.xlu0 %592, %v583
    %v594 = vpop.permute.xlu0 %593
    %597 = vset.pattern.permute.xlu0 0
    %598 = vperm.xlu0 %597, %v584
    %v599 = vpop.permute.xlu0 %598
    %602 = vset.pattern.permute.xlu0 0
    %603 = vperm.xlu0 %602, %v585
    %v604 = vpop.permute.xlu0 %603
    %607 = vset.pattern.permute.xlu0 0
    %608 = vperm.xlu0 %607, %v586
    %v609 = vpop.permute.xlu0 %608
    %612 = vset.pattern.permute.xlu0 0
    %613 = vperm.xlu0 %612, %v587
    %v614 = vpop.permute.xlu0 %613
    %617 = vset.pattern.permute.xlu0 0
    %618 = vperm.xlu0 %617, %v588
    %v619 = vpop.permute.xlu0 %618
    %622 = vset.pattern.permute.xlu0 0
    %623 = vperm.xlu0 %622, %v589
    %v624 = vpop.permute.xlu0 %623
    %627 = vset.pattern.permute.xlu0 0
    %628 = vperm.xlu0 %627, %v590
    %v629 = vpop.permute.xlu0 %628
    %v631 = vmul.f32 %v575, %v594
    %v632 = vmul.f32 %v576, %v599
    %v633 = vmul.f32 %v577, %v604
    %v634 = vmul.f32 %v578, %v609
    %v635 = vmul.f32 %v579, %v614
    %v636 = vmul.f32 %v580, %v619
    %v637 = vmul.f32 %v581, %v624
    %v638 = vmul.f32 %v582, %v629
    %v639 = vadd.f32 %v631, %v632
    %v640 = vadd.f32 %v639, %v633
    %v641 = vadd.f32 %v640, %v634
    %v642 = vadd.f32 %v641, %v635
    %v643 = vadd.f32 %v642, %v636
    %v644 = vadd.f32 %v643, %v637
    %v645 = vadd.f32 %v644, %v638
    %v646 = vrot.slane %v645, 4
    %v647 = vadd.f32 %v645, %v646
    %v648 = vrot.slane %v647, 2
    %v649 = vadd.f32 %v647, %v648
    %v650 = vrot.slane %v649, 1
    %v651 = vadd.f32 %v649, %v650
    %v652 = vld [vmem:[#allocation2] sm:$0x1]
    %654 = vset.pattern.permute.xlu0 0
    %655 = vperm.xlu0 %654, %v652
    %v656 = vpop.permute.xlu0 %655
    %v658 = vlaneseq
    %v659 = vshrl.u32 %v658, 7
    %v660 = vsub.s32 0, %v659
    %v661 = vrot.slane %v656, %v660
    %v662 = vadd.f32 %v651, %v661
    %v663 = vmul.f32 %v662, 0.5
    %v664 = vtanh.pop %v663
    %v665 = vadd.f32 %v664, 1.0
    %v666 = vmul.f32 %v665, 0.5
    %667 = vst [vmem:[#allocation3] sm:$0x1] %v666
    // Predicated region
    $region34: #{tpu_custom_call.1} parent=1 // pred_check
      _
    $region35: #{tpu_custom_call.1} parent=1 // pred_check_branch
      %669 = sbr.rel (0) target = $region37
    $region36: #{tpu_custom_call.1} parent=1 // pred_region
      %s671 = ssub.s32 16, 16
      %672 = vsyncadd [#allocation4], %s671
      %s674 = sshll.u32 [#allocation3], 4
      %s675 = int_to_ptr.vmem [resolvable:$true] %s674
      %677 = dma.vmem_to_hbm [thread:$0]  %s675, 16, %s8, [#allocation4]
    $region37: #{tpu_custom_call.1} parent=1 // pred_fallthru
      _
    // Predicated region
    $region38: #{tpu_custom_call.1} parent=1 // pred_check
      _
    $region39: #{tpu_custom_call.1} parent=1 // pred_check_branch
      %679 = sbr.rel (0) target = $region41
    $region40: #{tpu_custom_call.1} parent=1 // pred_region
      %680 = dma.done [#allocation4], 16
    $region41: #{tpu_custom_call.1} parent=1 // pred_fallthru
      _
    %681 = vsyncpa [#allocation4], 1

</llo_original>
